<compile_context>
chip_gen: v7x
topology: tpu7x:2x2x1
jax: 0.10.0
libtpu: 0.0.40
codegen_flags: <defaults>
</compile_context>

<pallas_src>
import math
from typing import NamedTuple

import jax
import jax.numpy as jnp
from jax import lax
from jax.experimental import pallas as pl
from jax.experimental.pallas import tpu as pltpu


_INV_SQRT2 = 1.0 / math.sqrt(2.0)
_MiB = 1024 * 1024
# Static unroll bound for the per-grid-step depth loop inside the kernel.
_MAX_DEPTH_BLOCK = 8


# ----------------------------------------------------------------------------
# Chip detection (budgets / quantization mode are per-generation).
# ----------------------------------------------------------------------------
class _ChipInfo(NamedTuple):
    device_kind: str
    physical_vmem_bytes: int
    two_tensorcores: bool
    use_int8_w1: bool
    min_grid_steps: int
    w1_stream_budget_bytes: int
    w1_buffers: int


def _chip_info() -> _ChipInfo:
    kind = ""
    try:
        kind = jax.devices()[0].device_kind.lower()
    except Exception:  # capability probe only; conservative defaults below
        pass
    physical = None
    try:
        physical = int(pltpu.get_tpu_info().vmem_capacity_bytes)
    except Exception:  # capability probe only; conservative defaults below
        physical = None

    is_v7 = "v7" in kind
    is_v5_or_v6 = ("v5" in kind or "v6" in kind) and not is_v7
    if physical is None:
        physical = 128 * _MiB if is_v5_or_v6 else 64 * _MiB

    two_tc = is_v7
    # int8 W1 only on the DMA-bound 128 MiB-VMEM parts (v5e/v6e); v7x (and
    # unknown chips) keep bf16 W1.
    use_int8 = is_v5_or_v6
    # At least 4 pipeline steps per core (8 total on a 2-TC part) so the W1
    # DMA overlaps compute instead of being fully exposed on short grids.
    min_steps = 8 if two_tc else 4
    # Per-generation W1 stream budget: tighter on 64 MiB-physical-VMEM parts.
    budget = 16 * _MiB if physical <= 64 * _MiB else 20 * _MiB
    # Third W1 pipeline buffer only where VMEM is plentiful (v5e/v6e).
    buffers = 3 if physical >= 96 * _MiB else 2
    return _ChipInfo(kind, physical, two_tc, use_int8, min_steps, budget, buffers)


# ----------------------------------------------------------------------------
# Kernel
# ----------------------------------------------------------------------------
def _prompt_body(feat_ref, w1_ref, b1_ref, ws_ref, bs_ref, out_ref, h_ref,
                 *, w1s_ref=None):
    dblk, B, _ = out_ref.shape

    # Shared feature, cast to bf16 ONCE so both dots are bf16 x bf16 with f32
    # accumulation (no per-layer f32 upcast of the weight tiles).
    x = feat_ref[...].astype(jnp.bfloat16)                        # (B, C)

    # First Linear + exact-erf GELU per layer of this depth block.  The static
    # unroll stays small (dblk <= 8) and every iteration's temporaries die into
    # the bf16 VMEM scratch, keeping vreg live ranges bounded (a fori_loop here
    # would need dynamic, sub-8-sublane-aligned scratch stores).
    for d in range(dblk):
        if w1s_ref is None:
            w1 = w1_ref[d]                                        # (C, H) bf16
        else:
            # int8 W1 + per-output-channel bf16 scales -> bf16 dequant on VPU,
            # fully hidden under the remaining W1 HBM stream.
            w1 = w1_ref[d].astype(jnp.bfloat16) * w1s_ref[d]      # (C, H) bf16
        h = jnp.dot(x, w1, preferred_element_type=jnp.float32) + b1_ref[d]
        h = 0.5 * h * (1.0 + lax.erf(h * _INV_SQRT2))             # exact GELU
        h_ref[pl.ds(d * B, B), :] = h.astype(jnp.bfloat16)

    # Shared MLP: ONE matmul per grid step covering all dblk layers, so the
    # shared Ws tile is pushed to the MXU once per depth block instead of once
    # per layer (a B=2 LHS never amortizes the push otherwise).
    out = (jnp.dot(h_ref[...], ws_ref[...], preferred_element_type=jnp.float32)
           + bs_ref[...])                                         # (dblk*B, O)
    for d in range(dblk):
        # NOTE: B=2 -> masked sublane stores; output traffic is ~10 KiB/layer,
        # negligible next to the W1 stream.
        out_ref[d] = out[d * B:(d + 1) * B, :].astype(out_ref.dtype)


def _prompt_kernel_bf16(feat_ref, w1_ref, b1_ref, ws_ref, bs_ref, out_ref, h_ref):
    _prompt_body(feat_ref, w1_ref, b1_ref, ws_ref, bs_ref, out_ref, h_ref)


def _prompt_kernel_int8(feat_ref, w1_ref, w1s_ref, b1_ref, ws_ref, bs_ref,
                        out_ref, h_ref):
    _prompt_body(feat_ref, w1_ref, b1_ref, ws_ref, bs_ref, out_ref, h_ref,
                 w1s_ref=w1s_ref)


# ----------------------------------------------------------------------------
# Tiling / budgets
# ----------------------------------------------------------------------------
def _choose_depth_block(depth, c, h, wbytes, *, min_steps, budget_bytes,
                        w1_buffers, prefer_even_grid):
    """Largest divisor of depth (<= _MAX_DEPTH_BLOCK) whose buffered W1 stream
    fits the budget while still leaving >= min_steps grid steps."""
    per_layer = c * h * wbytes
    need_steps = min(min_steps, depth)
    best = 1
    for cand in range(1, min(depth, _MAX_DEPTH_BLOCK) + 1):
        if depth % cand:
            continue
        if depth // cand < need_steps:
            continue
        if w1_buffers * cand * per_layer > budget_bytes:
            continue
        best = cand
    if prefer_even_grid and best > 1 and (depth // best) % 2 == 1:
        # Only on 2-TensorCore parts: prefer an even grid for megacore balance.
        for cand in range(best - 1, 0, -1):
            if (depth % cand == 0 and (depth // cand) % 2 == 0
                    and depth // cand >= need_steps):
                best = cand
                break
    return best


def _vmem_limit_bytes(dblk, b, c, h, o, wbytes, w1_buffers, physical_vmem):
    sub_b = max(((b + 7) // 8) * 8, 8)
    w1_stream = w1_buffers * dblk * c * h * wbytes
    # b1 + (int8 scales) + output blocks, double-buffered.
    small_stream = 2 * dblk * (8 * h * 4 + 8 * h * 2 + sub_b * o * 4)
    # Shared operands (feature, bf16 Ws, bs) with default double-buffering.
    shared = 2 * (sub_b * c * 4 + h * o * 2 + 8 * o * 4)
    scratch = (((dblk * b + 7) // 8) * 8) * h * 2
    est = w1_stream + small_stream + shared + scratch
    hi = min(48 * _MiB, int(physical_vmem * 0.6))
    return int(min(hi, max(int(1.5 * est), 16 * _MiB)))


def _w1_block_spec(block_shape, index_map, buffers):
    """W1 BlockSpec, with >2 pipeline buffers where requested and supported."""
    if buffers != 2:
        try:
            return pl.BlockSpec(block_shape, index_map,
                                pipeline_mode=pl.Buffered(buffers))
        except (AttributeError, TypeError):
            print("[audio_prompt_generator] pl.Buffered pipeline_mode "
                  "unsupported; using default double-buffering for W1")
    return pl.BlockSpec(block_shape, index_map)


# ----------------------------------------------------------------------------
# Weight quantization (v5e/v6e path)
# ----------------------------------------------------------------------------
def _quantize_w1_int8(w1):
    """Symmetric per-layer, per-output-channel int8 quantization of W1."""
    w1 = w1.astype(jnp.float32)
    amax = jnp.max(jnp.abs(w1), axis=1, keepdims=True)            # (D, 1, H)
    scale = (jnp.maximum(amax, 1e-8) / 127.0).astype(jnp.bfloat16)
    q = jnp.clip(jnp.round(w1 / scale.astype(jnp.float32)), -127.0, 127.0)
    return q.astype(jnp.int8), scale


def _dequantized_w1(q, scale):
    """Effective f32 W1 exactly as the kernel reconstructs it (bf16 dequant)."""
    return (q.astype(jnp.bfloat16) * scale).astype(jnp.float32)


# ----------------------------------------------------------------------------
# Public wrapper
# ----------------------------------------------------------------------------
def audio_prompt_generator(feature, w1, b1, ws, bs, *, quantize_w1=None,
                           depth_block=None):
    """feature: (B, C); w1: (D, C, H); b1: (D, 1, H); ws: (H, O); bs: (1, O).
    Returns stacked prompts of shape (D, B, O) in float32."""
    B, C = feature.shape
    D, C2, H = w1.shape
    assert C2 == C
    H2, O = ws.shape
    assert H2 == H

    info = _chip_info()
    if quantize_w1 is None:
        quantize_w1 = info.use_int8_w1

    feat_c = feature.astype(jnp.float32)
    b1_c = jnp.asarray(b1, jnp.float32).reshape(D, 1, H)
    ws_c = ws.astype(jnp.bfloat16)
    bs_c = jnp.asarray(bs, jnp.float32).reshape(1, O)

    wbytes = 1 if quantize_w1 else 2
    dblk = depth_block if depth_block is not None else _choose_depth_block(
        D, C, H, wbytes, min_steps=info.min_grid_steps,
        budget_bytes=info.w1_stream_budget_bytes, w1_buffers=info.w1_buffers,
        prefer_even_grid=info.two_tensorcores)
    if D % dblk != 0:
        raise ValueError(f"depth_block={dblk} must divide depth={D}")
    grid = (D // dblk,)

    feat_spec = pl.BlockSpec((B, C), lambda i: (0, 0))
    w1_spec = _w1_block_spec((dblk, C, H), lambda i: (i, 0, 0), info.w1_buffers)
    b1_spec = pl.BlockSpec((dblk, 1, H), lambda i: (i, 0, 0))
    ws_spec = pl.BlockSpec((H, O), lambda i: (0, 0))
    bs_spec = pl.BlockSpec((1, O), lambda i: (0, 0))

    if quantize_w1:
        w1_q, w1_s = _quantize_w1_int8(w1)
        kernel = _prompt_kernel_int8
        in_specs = [feat_spec, w1_spec,
                    pl.BlockSpec((dblk, 1, H), lambda i: (i, 0, 0)),
                    b1_spec, ws_spec, bs_spec]
        inputs = (feat_c, w1_q, w1_s, b1_c, ws_c, bs_c)
    else:
        kernel = _prompt_kernel_bf16
        in_specs = [feat_spec, w1_spec, b1_spec, ws_spec, bs_spec]
        inputs = (feat_c, w1.astype(jnp.bfloat16), b1_c, ws_c, bs_c)

    grid_spec = pltpu.PrefetchScalarGridSpec(
        num_scalar_prefetch=0,
        grid=grid,
        in_specs=in_specs,
        out_specs=pl.BlockSpec((dblk, B, O), lambda i: (i, 0, 0)),
        scratch_shapes=[pltpu.VMEM((dblk * B, H), jnp.bfloat16)],
    )
    call = pl.pallas_call(
        kernel,
        out_shape=jax.ShapeDtypeStruct((D, B, O), jnp.float32),
        grid_spec=grid_spec,
        compiler_params=pltpu.CompilerParams(
            dimension_semantics=("parallel",),
            vmem_limit_bytes=_vmem_limit_bytes(
                dblk, B, C, H, O, wbytes, info.w1_buffers,
                info.physical_vmem_bytes),
        ),
    )
    return call(*inputs)


# ----------------------------------------------------------------------------
# References and test
# ----------------------------------------------------------------------------
def _trunc_normal(key, shape, std=0.02):
    # trunc_normal_(std=0.02) truncates at +/- 2 std.
    return std * jax.random.truncated_normal(key, -2.0, 2.0, shape, jnp.float32)


def _reference_f32(feature, w1, b1, ws, bs):
    """Full-f32 math of the PyTorch forward (depth != 48 branch)."""
    h = jnp.einsum("bc,dch->dbh", feature, w1, precision="highest") + b1
    h = 0.5 * h * (1.0 + lax.erf(h * _INV_SQRT2))
    return jnp.einsum("dbh,ho->dbo", h, ws, precision="highest") + bs[None, :, :]


def _reference_kernel_precision(feature, w1_eff, b1, ws_eff, bs):
    """Same precision pipeline as the kernel: bf16 operands into both matmuls
    (weights already rounded / dequantized), f32 accumulation."""
    x = feature.astype(jnp.bfloat16).astype(jnp.float32)
    h = jnp.einsum("bc,dch->dbh", x, w1_eff, precision="highest") + b1
    h = 0.5 * h * (1.0 + lax.erf(h * _INV_SQRT2))
    hb = h.astype(jnp.bfloat16).astype(jnp.float32)
    return jnp.einsum("dbh,ho->dbo", hb, ws_eff, precision="highest") + bs[None, :, :]


if __name__ == "__main__":
    # Small, module-consistent shapes (depth != 48 branch).
    DEPTH = 4            # lightweight MLP (Linear+GELU) + shared Linear(hidden, 1280)
    B = 2
    AUD_IN_DIM = 32      # stand-in for 1024
    AUD_HIDDEN_DIM = 32  # stand-in for 1024
    OUT_DIM = 1280       # fixed by the module for the depth != 48 branch

    key = jax.random.PRNGKey(0)
    k_feat, k_w1, k_ws = jax.random.split(key, 3)

    feature = jax.random.normal(k_feat, (B, AUD_IN_DIM), jnp.float32)

    # Deterministic init mirroring _init_weights (trunc_normal std=0.02, zero bias).
    w1 = _trunc_normal(k_w1, (DEPTH, AUD_IN_DIM, AUD_HIDDEN_DIM))
    b1 = jnp.zeros((DEPTH, 1, AUD_HIDDEN_DIM), jnp.float32)
    ws = _trunc_normal(k_ws, (AUD_HIDDEN_DIM, OUT_DIM))
    bs = jnp.zeros((1, OUT_DIM), jnp.float32)

    info = _chip_info()
    out = audio_prompt_generator(feature, w1, b1, ws, bs,
                                 quantize_w1=info.use_int8_w1)
    out = jax.block_until_ready(out)
    assert out.shape == (DEPTH, B, OUT_DIM)

    # Tight check: reference applies exactly the weight rounding / activation
    # casts the kernel uses (bf16 or int8-dequant W1, bf16 Ws, bf16 x / h).
    if info.use_int8_w1:
        w1_q, w1_s = _quantize_w1_int8(w1)
        w1_eff = _dequantized_w1(w1_q, w1_s)
    else:
        w1_eff = w1.astype(jnp.bfloat16).astype(jnp.float32)
    ws_eff = ws.astype(jnp.bfloat16).astype(jnp.float32)
    ref_kp = _reference_kernel_precision(feature, w1_eff, b1, ws_eff, bs)
    max_err = float(jnp.max(jnp.abs(out - ref_kp)))
    assert jnp.allclose(out, ref_kp, atol=5e-4, rtol=5e-3), max_err

    # Loose sanity check against full-f32 module math (low-precision weight
    # storage is the intentional perf tradeoff; error is tiny at these scales).
    ref_f32 = _reference_f32(feature, w1, b1, ws, bs)
    assert jnp.allclose(out, ref_f32, atol=1e-2, rtol=1e-1)

    # prompts list as returned by the PyTorch module:
    prompts = [out[i] for i in range(DEPTH)]
    assert all(p.shape == (B, OUT_DIM) for p in prompts)

    # TODO(synk): depth == 48 branch (per-layer second Linear with ragged
    # per-layer channel widths) would need per-width kernels or padding to the
    # max channel count; not implemented here.
    print("KERNEL_OK")
</pallas_src>

<mosaic_0001>
module attributes {stable_mosaic.version = 11 : i64} {
  func.func @_prompt_kernel_bf16(%arg0: i32, %arg1: memref<2x32xf32, #tpu.memory_space<vmem>>, %arg2: memref<1x32x32xbf16, #tpu.memory_space<vmem>>, %arg3: memref<1x1x32xf32, #tpu.memory_space<vmem>>, %arg4: memref<32x1280xbf16, #tpu.memory_space<vmem>>, %arg5: memref<1x1280xf32, #tpu.memory_space<vmem>>, %arg6: memref<1x2x1280xf32, #tpu.memory_space<vmem>>, %arg7: memref<2x32xbf16, #tpu.memory_space<vmem>>) attributes {dimension_semantics = [#tpu.dimension_semantics<parallel>], iteration_bounds = array<i64: 4>, scalar_prefetch = 0 : i64, scratch_operands = 1 : i64, tpu.core_type = #tpu.core_type<tc>, window_params = [{pipeline_mode = #tpu.pipeline_mode<synchronous>, transform_indices = @transform_0, window_bounds = array<i64: 2, 32>}, {transform_indices = @transform_1, window_bounds = array<i64: 1, 32, 32>}, {transform_indices = @transform_2, window_bounds = array<i64: 1, 1, 32>}, {pipeline_mode = #tpu.pipeline_mode<synchronous>, transform_indices = @transform_3, window_bounds = array<i64: 32, 1280>}, {pipeline_mode = #tpu.pipeline_mode<synchronous>, transform_indices = @transform_4, window_bounds = array<i64: 1, 1280>}, {transform_indices = @transform_5, window_bounds = array<i64: 1, 2, 1280>}]} {
    %c0 = arith.constant 0 : index
    %c0_0 = arith.constant 0 : index
    %0 = vector.load %arg1[%c0, %c0_0] : memref<2x32xf32, #tpu.memory_space<vmem>>, vector<2x32xf32>
    %1 = arith.truncf %0 : vector<2x32xf32> to vector<2x32xbf16>
    %c0_1 = arith.constant 0 : index
    %c0_2 = arith.constant 0 : index
    %c0_3 = arith.constant 0 : index
    %2 = vector.load %arg2[%c0_1, %c0_2, %c0_3] : memref<1x32x32xbf16, #tpu.memory_space<vmem>>, vector<1x32x32xbf16>
    %3 = vector.shape_cast %2 : vector<1x32x32xbf16> to vector<32x32xbf16>
    %cst = arith.constant dense<0.000000e+00> : vector<2x32xf32>
    %4 = tpu.matmul %1, %3, %cst {dimension_numbers = #tpu.dot_dimension_numbers<[1], [0], [0], [1], [0, 0, 1, 1], [], []>} : vector<2x32xbf16>, vector<32x32xbf16>, vector<2x32xf32> -> vector<2x32xf32>
    %c0_4 = arith.constant 0 : index
    %c0_5 = arith.constant 0 : index
    %c0_6 = arith.constant 0 : index
    %5 = vector.load %arg3[%c0_4, %c0_5, %c0_6] : memref<1x1x32xf32, #tpu.memory_space<vmem>>, vector<1x1x32xf32>
    %6 = vector.shape_cast %5 : vector<1x1x32xf32> to vector<1x32xf32>
    %7 = vector.broadcast %6 : vector<1x32xf32> to vector<2x32xf32>
    %8 = arith.addf %4, %7 : vector<2x32xf32>
    %cst_7 = arith.constant 5.000000e-01 : f32
    %9 = vector.broadcast %cst_7 : f32 to vector<2x32xf32>
    %10 = arith.mulf %9, %8 : vector<2x32xf32>
    %cst_8 = arith.constant 0.707106769 : f32
    %11 = vector.broadcast %cst_8 : f32 to vector<2x32xf32>
    %12 = arith.mulf %8, %11 : vector<2x32xf32>
    %13 = math.erf %12 : vector<2x32xf32>
    %cst_9 = arith.constant 1.000000e+00 : f32
    %14 = vector.broadcast %cst_9 : f32 to vector<2x32xf32>
    %15 = arith.addf %14, %13 : vector<2x32xf32>
    %16 = arith.mulf %10, %15 : vector<2x32xf32>
    %17 = arith.truncf %16 : vector<2x32xf32> to vector<2x32xbf16>
    %c0_10 = arith.constant 0 : index
    %c0_11 = arith.constant 0 : index
    %18 = vector.load %arg7[%c0_10, %c0_11] : memref<2x32xbf16, #tpu.memory_space<vmem>>, vector<2x32xbf16>
    tpu.vector_store %arg7[%c0_10, %c0_11], %17 {strides = array<i32>} : memref<2x32xbf16, #tpu.memory_space<vmem>>, vector<2x32xbf16>,
    %c0_12 = arith.constant 0 : index
    %c0_13 = arith.constant 0 : index
    %19 = vector.load %arg7[%c0_12, %c0_13] : memref<2x32xbf16, #tpu.memory_space<vmem>>, vector<2x32xbf16>
    %c0_14 = arith.constant 0 : index
    %c0_15 = arith.constant 0 : index
    %20 = vector.load %arg4[%c0_14, %c0_15] : memref<32x1280xbf16, #tpu.memory_space<vmem>>, vector<32x1280xbf16>
    %cst_16 = arith.constant dense<0.000000e+00> : vector<2x1280xf32>
    %21 = tpu.matmul %19, %20, %cst_16 {dimension_numbers = #tpu.dot_dimension_numbers<[1], [0], [0], [1], [0, 0, 1, 1], [], []>} : vector<2x32xbf16>, vector<32x1280xbf16>, vector<2x1280xf32> -> vector<2x1280xf32>
    %c0_17 = arith.constant 0 : index
    %c0_18 = arith.constant 0 : index
    %22 = vector.load %arg5[%c0_17, %c0_18] : memref<1x1280xf32, #tpu.memory_space<vmem>>, vector<1x1280xf32>
    %23 = vector.broadcast %22 : vector<1x1280xf32> to vector<2x1280xf32>
    %24 = arith.addf %21, %23 : vector<2x1280xf32>
    %c0_19 = arith.constant 0 : index
    %c0_20 = arith.constant 0 : index
    %c0_21 = arith.constant 0 : index
    %25 = vector.load %arg6[%c0_19, %c0_20, %c0_21] : memref<1x2x1280xf32, #tpu.memory_space<vmem>>, vector<1x2x1280xf32>
    %26 = vector.shape_cast %25 : vector<1x2x1280xf32> to vector<2x1280xf32>
    %27 = vector.shape_cast %24 : vector<2x1280xf32> to vector<1x2x1280xf32>
    tpu.vector_store %arg6[%c0_19, %c0_20, %c0_21], %27 {strides = array<i32>} : memref<1x2x1280xf32, #tpu.memory_space<vmem>>, vector<1x2x1280xf32>,
    return
  }
  func.func @transform_0(%arg0: i32) -> (i32, i32) {
    %c0_i32 = arith.constant 0 : i32
    %c0_i32_0 = arith.constant 0 : i32
    %c0_i32_1 = arith.constant 0 : i32
    return %c0_i32, %c0_i32_0 : i32, i32
  }
  func.func @transform_1(%arg0: i32) -> (i32, i32, i32) {
    %c0_i32 = arith.constant 0 : i32
    %c0_i32_0 = arith.constant 0 : i32
    %c0_i32_1 = arith.constant 0 : i32
    return %arg0, %c0_i32, %c0_i32_0 : i32, i32, i32
  }
  func.func @transform_2(%arg0: i32) -> (i32, i32, i32) {
    %c0_i32 = arith.constant 0 : i32
    %c0_i32_0 = arith.constant 0 : i32
    %c0_i32_1 = arith.constant 0 : i32
    return %arg0, %c0_i32, %c0_i32_0 : i32, i32, i32
  }
  func.func @transform_3(%arg0: i32) -> (i32, i32) {
    %c0_i32 = arith.constant 0 : i32
    %c0_i32_0 = arith.constant 0 : i32
    %c0_i32_1 = arith.constant 0 : i32
    return %c0_i32, %c0_i32_0 : i32, i32
  }
  func.func @transform_4(%arg0: i32) -> (i32, i32) {
    %c0_i32 = arith.constant 0 : i32
    %c0_i32_0 = arith.constant 0 : i32
    %c0_i32_1 = arith.constant 0 : i32
    return %c0_i32, %c0_i32_0 : i32, i32
  }
  func.func @transform_5(%arg0: i32) -> (i32, i32, i32) {
    %c0_i32 = arith.constant 0 : i32
    %c0_i32_0 = arith.constant 0 : i32
    %c0_i32_1 = arith.constant 0 : i32
    return %arg0, %c0_i32, %c0_i32_0 : i32, i32, i32
  }
}

</mosaic_0001>

<llo_original>
// kernel: tpu_custom_call.1
$region0: #{tpu_custom_call.1}
  #allocation0 [shape = 'u32[]', space=smem, size = 0x4, offset = 0x4, fixed_abs, tag = 'smem constant byte address 0x4 - core index']
  #allocation1 [shape = 'u32[144,128]{1,0:T(1,128)}', space=vmem, size = 0x12000, scoped, tag = 'internal scratch']
  #allocation2 [shape = 'bf16[2,32]{1,0:T(2,128)(2,1)}', space=vmem, size = 0x200, scoped, tag = 'scratch operand']
  %s0 = inlined_call_operand.hbm [shape: f32[2,32], index: 0, kind: input, shape index: {}]
  %s1 = inlined_call_operand.hbm [shape: bf16[4,32,32], index: 1, kind: input, shape index: {}]
  %s2 = inlined_call_operand.vmem [shape: f32[4,1,32], index: 2, kind: input, shape index: {}]
  %s3 = inlined_call_operand.hbm [shape: bf16[32,1280], index: 3, kind: input, shape index: {}]
  %s4 = inlined_call_operand.vmem [shape: f32[1,1280], index: 4, kind: input, shape index: {}]
  %s5 = inlined_call_operand.hbm [shape: f32[4,2,1280], index: 5, kind: output, shape index: {}]
  %s6 = sld [smem:[#allocation0]]
  $region65: #{tpu_custom_call.1} parent=0
    _
  %s8 = ssub.s32 1, %s6
  %s9 = scalar_select 0, %s8, %s6
  $region1: #{tpu_custom_call.1} parent=0
    #allocation3 [shape = 'u8[1024]{0}', space=vmem, size = 0x400, scoped, tag = 'input window, operand 0, single buffered']
    #allocation4 [shape = 's32[2]{0}', space=sflag, size = 0x8, scoped, tag = 'scoped memory for tpu_custom_call.1']
    #allocation5 [shape = 's32[2]{0}', space=sflag, size = 0x8, scoped, tag = 'scoped memory for tpu_custom_call.1']
    #allocation6 [shape = 'u8[16384]{0}', space=vmem, size = 0x4000, scoped, tag = 'input window, operand 1']
    #allocation7 [shape = 's32[2]{0}', space=sflag, size = 0x8, scoped, tag = 'scoped memory for tpu_custom_call.1']
    #allocation8 [shape = 'u8[81920]{0}', space=vmem, size = 0x14000, scoped, tag = 'input window, operand 3, single buffered']
    #allocation9 [shape = 'u8[20480]{0}', space=vmem, size = 0x5000, scoped, tag = 'output window, operand 0']
    %10 = vsyncpa [#allocation4], 0
    %11 = vsyncpa [#allocation7], 0
    %s12 = scalar_lea.sflag [#allocation7], 1
    %13 = vsyncpa %s12, 0
    %14 = vsyncpa [#allocation5], 0
    %s15 = scalar_lea.sflag [#allocation5], 1
    %16 = vsyncpa %s15, 0
    loop: start=0, step=1, limit=6
    $region2: #{tpu_custom_call.1} parent=1 // loop_pre_header
      _
    $region3: #{tpu_custom_call.1} parent=1 // loop_header
      %s18 = sphi 0, %s22
      %p19 = scmp.ge.s32.totalorder %s18, 6
      %s26 = sphi 0, %s26
      %s28 = sphi 0, %s26
      %s29 = sphi 0, %s28
      %s43 = sphi 0, %s29
      %s49 = sphi 0, %s51
      %s52 = sphi 0, %s49
      %s53 = sphi 0, %s52
      %s69 = sphi 0, %s53
      %s75 = sphi 0, %s77
      %s78 = sphi 0, %s75
      %s79 = sphi 0, %s78
      %s95 = sphi 0, %s79
      %s99 = sphi 0, %s99
      %s101 = sphi 0, %s99
      %s102 = sphi 0, %s101
      %s116 = sphi 0, %s102
      %s120 = sphi 0, %s120
      %s122 = sphi 0, %s120
      %s123 = sphi 0, %s122
      %s137 = sphi 0, %s123
      %s143 = sphi 0, %s145
      %s146 = sphi 0, %s143
      %s147 = sphi 0, %s146
      %s163 = sphi 0, %s147
    $region4: #{tpu_custom_call.1} parent=1 // loop_header_branch
      %21 = sbr.rel (%p19) target = $region8
    $region5: #{tpu_custom_call.1} parent=1 // loop_body
      %s23 = ssub.s32 %s18, 1
      %s24 = ssub.s32 %s18, 2
      %s25 = sadd.s32 %s18, 1
      %s27 = sadd.s32 %s26, 1
      %p30 = scmp.eq.s32.totalorder %s18, 3
      %p31 = scmp.ne.s32.totalorder %s26, %s28
      %p32 = scmp.eq.s32.totalorder %s18, 0
      %p33 = por %p31, %p32
      %p34 = scmp.ne.s32.totalorder %s26, %s28
      %p35 = scmp.eq.s32.totalorder %s23, 3
      %p36 = por %p34, %p35
      %p37 = scmp.ne.s32.totalorder %s28, %s29
      %p38 = scmp.eq.s32.totalorder %s23, 0
      %p39 = por %p37, %p38
      %p40 = scmp.ne.s32.totalorder %s28, %s29
      %p41 = scmp.eq.s32.totalorder %s24, 3
      %p42 = por %p40, %p41
      %p44 = scmp.ne.s32.totalorder %s29, %s43
      %p45 = scmp.eq.s32.totalorder %s24, 0
      %p46 = por %p44, %p45
      %s47 = ssub.s32 %s18, %s25
      %p48 = scmp.eq.s32.totalorder %s47, 0
      %s50 = sadd.s32 %s49, 1
      %s51 = scalar_select %p48, %s49, %s50
      %p54 = pneg %p48
      %p55 = scmp.eq.s32.totalorder %s18, 3
      %p56 = por %p54, %p55
      %p57 = scmp.ne.s32.totalorder %s49, %s52
      %p58 = scmp.eq.s32.totalorder %s18, 0
      %p59 = por %p57, %p58
      %p60 = scmp.ne.s32.totalorder %s49, %s52
      %p61 = scmp.eq.s32.totalorder %s23, 3
      %p62 = por %p60, %p61
      %p63 = scmp.ne.s32.totalorder %s52, %s53
      %p64 = scmp.eq.s32.totalorder %s23, 0
      %p65 = por %p63, %p64
      %p66 = scmp.ne.s32.totalorder %s52, %s53
      %p67 = scmp.eq.s32.totalorder %s24, 3
      %p68 = por %p66, %p67
      %p70 = scmp.ne.s32.totalorder %s53, %s69
      %p71 = scmp.eq.s32.totalorder %s24, 0
      %p72 = por %p70, %p71
      %s73 = ssub.s32 %s18, %s25
      %p74 = scmp.eq.s32.totalorder %s73, 0
      %s76 = sadd.s32 %s75, 1
      %s77 = scalar_select %p74, %s75, %s76
      %p80 = pneg %p74
      %p81 = scmp.eq.s32.totalorder %s18, 3
      %p82 = por %p80, %p81
      %p83 = scmp.ne.s32.totalorder %s75, %s78
      %p84 = scmp.eq.s32.totalorder %s18, 0
      %p85 = por %p83, %p84
      %p86 = scmp.ne.s32.totalorder %s75, %s78
      %p87 = scmp.eq.s32.totalorder %s23, 3
      %p88 = por %p86, %p87
      %p89 = scmp.ne.s32.totalorder %s78, %s79
      %p90 = scmp.eq.s32.totalorder %s23, 0
      %p91 = por %p89, %p90
      %p92 = scmp.ne.s32.totalorder %s78, %s79
      %p93 = scmp.eq.s32.totalorder %s24, 3
      %p94 = por %p92, %p93
      %p96 = scmp.ne.s32.totalorder %s79, %s95
      %p97 = scmp.eq.s32.totalorder %s24, 0
      %p98 = por %p96, %p97
      %s100 = sadd.s32 %s99, 1
      %p103 = scmp.eq.s32.totalorder %s18, 3
      %p104 = scmp.ne.s32.totalorder %s99, %s101
      %p105 = scmp.eq.s32.totalorder %s18, 0
      %p106 = por %p104, %p105
      %p107 = scmp.ne.s32.totalorder %s99, %s101
      %p108 = scmp.eq.s32.totalorder %s23, 3
      %p109 = por %p107, %p108
      %p110 = scmp.ne.s32.totalorder %s101, %s102
      %p111 = scmp.eq.s32.totalorder %s23, 0
      %p112 = por %p110, %p111
      %p113 = scmp.ne.s32.totalorder %s101, %s102
      %p114 = scmp.eq.s32.totalorder %s24, 3
      %p115 = por %p113, %p114
      %p117 = scmp.ne.s32.totalorder %s102, %s116
      %p118 = scmp.eq.s32.totalorder %s24, 0
      %p119 = por %p117, %p118
      %s121 = sadd.s32 %s120, 1
      %p124 = scmp.eq.s32.totalorder %s18, 3
      %p125 = scmp.ne.s32.totalorder %s120, %s122
      %p126 = scmp.eq.s32.totalorder %s18, 0
      %p127 = por %p125, %p126
      %p128 = scmp.ne.s32.totalorder %s120, %s122
      %p129 = scmp.eq.s32.totalorder %s23, 3
      %p130 = por %p128, %p129
      %p131 = scmp.ne.s32.totalorder %s122, %s123
      %p132 = scmp.eq.s32.totalorder %s23, 0
      %p133 = por %p131, %p132
      %p134 = scmp.ne.s32.totalorder %s122, %s123
      %p135 = scmp.eq.s32.totalorder %s24, 3
      %p136 = por %p134, %p135
      %p138 = scmp.ne.s32.totalorder %s123, %s137
      %p139 = scmp.eq.s32.totalorder %s24, 0
      %p140 = por %p138, %p139
      %s141 = ssub.s32 %s18, %s25
      %p142 = scmp.eq.s32.totalorder %s141, 0
      %s144 = sadd.s32 %s143, 1
      %s145 = scalar_select %p142, %s143, %s144
      %p148 = pneg %p142
      %p149 = scmp.eq.s32.totalorder %s18, 3
      %p150 = por %p148, %p149
      %p151 = scmp.ne.s32.totalorder %s143, %s146
      %p152 = scmp.eq.s32.totalorder %s18, 0
      %p153 = por %p151, %p152
      %p154 = scmp.ne.s32.totalorder %s143, %s146
      %p155 = scmp.eq.s32.totalorder %s23, 3
      %p156 = por %p154, %p155
      %p157 = scmp.ne.s32.totalorder %s146, %s147
      %p158 = scmp.eq.s32.totalorder %s23, 0
      %p159 = por %p157, %p158
      %p160 = scmp.ne.s32.totalorder %s146, %s147
      %p161 = scmp.eq.s32.totalorder %s24, 3
      %p162 = por %p160, %p161
      %p164 = scmp.ne.s32.totalorder %s147, %s163
      %p165 = scmp.eq.s32.totalorder %s24, 0
      %p166 = por %p164, %p165
      %p167 = scmp.le.s32.totalorder 1, %s18
      %p168 = scmp.lt.s32.totalorder %s18, 5
      %p169 = pnand %p167, %p168
      %p170 = pneg %p169
      // Predicated region
      $region9: #{tpu_custom_call.1} parent=5 // pred_check
        _
      $region10: #{tpu_custom_call.1} parent=5 // pred_check_branch
        %172 = sbr.rel (%p169) target = $region12
      $region11: #{tpu_custom_call.1} parent=5 // pred_region
        %s173 = ssub.s32 %s18, 1
        // Predicated region
        $region13: #{tpu_custom_call.1} parent=11 // pred_check
          %p174 = pneg %p39
        $region14: #{tpu_custom_call.1} parent=11 // pred_check_branch
          %176 = sbr.rel (%p174) target = $region16
        $region15: #{tpu_custom_call.1} parent=11 // pred_region
          %s178 = ssub.s32 32, 32
          %179 = vsyncadd [#allocation4], %s178
          %s181 = sshll.u32 [#allocation3], 4
          %s182 = int_to_ptr.vmem [resolvable:$true] %s181
          %184 = dma.hbm_to_vmem [thread:$0]  %s0, 32, %s182, [#allocation4]
        $region16: #{tpu_custom_call.1} parent=11 // pred_fallthru
          _
        // Predicated region
        $region17: #{tpu_custom_call.1} parent=11 // pred_check
          %p185 = pneg %p112
        $region18: #{tpu_custom_call.1} parent=11 // pred_check_branch
          %187 = sbr.rel (%p185) target = $region20
        $region19: #{tpu_custom_call.1} parent=11 // pred_region
          %s189 = ssub.s32 2560, 2560
          %190 = vsyncadd [#allocation7], %s189
          %s191 = sshll.u32 [#allocation8], 4
          %s192 = int_to_ptr.vmem [resolvable:$true] %s191
          %197 = dma.hbm_to_vmem [thread:$0]  %s3, 2560, %s192, [#allocation7], 640, 640, 40
        $region20: #{tpu_custom_call.1} parent=11 // pred_fallthru
          _
        // Predicated region
        $region21: #{tpu_custom_call.1} parent=11 // pred_check
          %p198 = pneg %p133
        $region22: #{tpu_custom_call.1} parent=11 // pred_check_branch
          %200 = sbr.rel (%p198) target = $region24
        $region23: #{tpu_custom_call.1} parent=11 // pred_region
          _
        $region24: #{tpu_custom_call.1} parent=11 // pred_fallthru
          _
      $region12: #{tpu_custom_call.1} parent=5 // pred_fallthru
        _
      %p201 = scmp.lt.s32.totalorder %s18, 4
      // Predicated region
      $region25: #{tpu_custom_call.1} parent=5 // pred_check
        %p202 = pneg %p201
      $region26: #{tpu_custom_call.1} parent=5 // pred_check_branch
        %204 = sbr.rel (%p202) target = $region28
      $region27: #{tpu_custom_call.1} parent=5 // pred_region
        // Predicated region
        $region29: #{tpu_custom_call.1} parent=27 // pred_check
          %p205 = pneg %p59
        $region30: #{tpu_custom_call.1} parent=27 // pred_check_branch
          %207 = sbr.rel (%p205) target = $region32
        $region31: #{tpu_custom_call.1} parent=27 // pred_region
          %s208 = sand.u32 %s18, 1
          %s209 = scalar_lea.sflag [#allocation7], %s208
          %s210 = sand.u32 %s49, 1
          %s211 = smul.addr %s210, 16
          %s212 = scalar_lea.vmem [#allocation6], %s211
          %s214 = ssub.s32 256, 256
          %215 = vsyncadd %s209, %s214
          %s216 = smul.addr %s18, 4
          %s217 = smul.addr %s216, 64
          %s218 = scalar_lea.hbm %s1, %s217
          %s219 = sshll.u32 %s212, 4
          %s220 = int_to_ptr.vmem [resolvable:$true] %s219
          %225 = dma.hbm_to_vmem [thread:$0]  %s218, 256, %s220, %s209, 64, 64, 4
        $region32: #{tpu_custom_call.1} parent=27 // pred_fallthru
          _
        // Predicated region
        $region33: #{tpu_custom_call.1} parent=27 // pred_check
          %p226 = pneg %p85
        $region34: #{tpu_custom_call.1} parent=27 // pred_check_branch
          %228 = sbr.rel (%p226) target = $region36
        $region35: #{tpu_custom_call.1} parent=27 // pred_region
          %p229 = scmp.lt.s32.totalorder %s18, 3
          %s230 = scalar_select %p229, %s18, 3
          %s231 = scalar_lea.vmem %s2, %s230
        $region36: #{tpu_custom_call.1} parent=27 // pred_fallthru
          _
      $region28: #{tpu_custom_call.1} parent=5 // pred_fallthru
        _
      %p232 = scmp.le.s32.totalorder 1, %s18
      %p233 = scmp.lt.s32.totalorder %s18, 5
      %p234 = pnand %p232, %p233
      %p235 = pneg %p234
      // Predicated region
      $region37: #{tpu_custom_call.1} parent=5 // pred_check
        _
      $region38: #{tpu_custom_call.1} parent=5 // pred_check_branch
        %237 = sbr.rel (%p234) target = $region40
      $region39: #{tpu_custom_call.1} parent=5 // pred_region
        %s238 = ssub.s32 %s18, 1
        // Predicated region
        $region41: #{tpu_custom_call.1} parent=39 // pred_check
          %p239 = pneg %p39
        $region42: #{tpu_custom_call.1} parent=39 // pred_check_branch
          %241 = sbr.rel (%p239) target = $region44
        $region43: #{tpu_custom_call.1} parent=39 // pred_region
          %242 = dma.done [#allocation4], 32
        $region44: #{tpu_custom_call.1} parent=39 // pred_fallthru
          _
        %s243 = sand.u32 %s23, 1
        %s244 = scalar_lea.sflag [#allocation7], %s243
        %s245 = sand.u32 %s52, 1
        %s246 = smul.addr %s245, 16
        %s247 = scalar_lea.vmem [#allocation6], %s246
        // Predicated region
        $region45: #{tpu_custom_call.1} parent=39 // pred_check
          %p248 = pneg %p65
        $region46: #{tpu_custom_call.1} parent=39 // pred_check_branch
          %250 = sbr.rel (%p248) target = $region48
        $region47: #{tpu_custom_call.1} parent=39 // pred_region
          %251 = dma.done %s244, 256
        $region48: #{tpu_custom_call.1} parent=39 // pred_fallthru
          _
        // Predicated region
        $region49: #{tpu_custom_call.1} parent=39 // pred_check
          %p252 = pneg %p112
        $region50: #{tpu_custom_call.1} parent=39 // pred_check_branch
          %254 = sbr.rel (%p252) target = $region52
        $region51: #{tpu_custom_call.1} parent=39 // pred_region
          %255 = dma.done [#allocation7], 2560
        $region52: #{tpu_custom_call.1} parent=39 // pred_fallthru
          _
        %p256 = pneg %p39
        %p257 = pneg %p36
        %s258 = sand.u32 %s23, 1
        %s259 = scalar_lea.sflag [#allocation7], %s258
        %s260 = sand.u32 %s52, 1
        %s261 = smul.addr %s260, 16
        %s262 = scalar_lea.vmem [#allocation6], %s261
        %p263 = pneg %p65
        %p264 = pneg %p62
        %p265 = scmp.lt.s32.totalorder %s23, 3
        %s266 = scalar_select %p265, %s23, 3
        %s267 = scalar_lea.vmem %s2, %s266
        %p268 = pneg %p91
        %p269 = pneg %p88
        %p270 = pneg %p112
        %p271 = pneg %p109
        %p272 = pneg %p133
        %p273 = pneg %p130
        %p274 = pneg %p159
        %p275 = pneg %p156
        %s276 = sand.u32 %s146, 1
        %s277 = scalar_lea.sflag [#allocation5], %s276
        %s278 = sand.u32 %s146, 1
        %s279 = smul.addr %s278, 20
        %s280 = scalar_lea.vmem [#allocation9], %s279
        %p281 = scmp.lt.s32.totalorder %s23, 3
        %s282 = scalar_select %p281, %s23, 3
        %s283 = scalar_lea.vmem %s2, %s282
        %v285 = vld [vmem:[#allocation3] sm:$0x3]
        %v286 = vpack.c.bf16 %v285, %v285
        %v287 = vld [vmem:[%s247] sm:$0xf]
        %v288 = vld [vmem:[%s247 + $0x4] sm:$0xf]
        %v289 = vld [vmem:[%s247 + $0x8] sm:$0xf]
        %v290 = vld [vmem:[%s247 + $0xc] sm:$0xf]
        %v291 = vld [vmem:[%s283] sm:$0x1]
        %v293 = vlaneseq
        %v294 = vshrl.u32 %v293, 7
        %v295 = vsub.s32 0, %v294
        %v296 = vrot.slane %v291, %v295
        %v302 = vunpack.c.l.b16 %v287
        %v303 = vunpack.c.l.b16 %v288
        %v304 = vunpack.c.l.b16 %v289
        %v305 = vunpack.c.l.b16 %v290
        %v306 = vpack.c.b16 %v303, %v302
        %v307 = vpack.c.b16 %v305, %v304
        %vm310 = vcmask 261120
        %v312 = vsel %vm310, %v286, 0
        %314 = vmatprep.subr.bf16.mxu0 0
        %315 = vmatpush1.bf16.msra.mxu0 %v306
        %316 = vmatprep.subr.bf16.mxu0 0
        %317 = vmatpush1.bf16.msra.mxu0 %v307
        %318 = vmatprep.subr.bf16.mxu0 0
        %319 = vmatpush1.bf16.msra.mxu0 0
        %320 = vmatprep.subr.bf16.mxu0 0
        %321 = vmatpush1.bf16.msra.mxu0 0
        %322 = vmatprep.subr.bf16.mxu0 0
        %323 = vmatpush1.bf16.msra.mxu0 0
        %324 = vmatprep.subr.bf16.mxu0 0
        %325 = vmatpush1.bf16.msra.mxu0 0
        %326 = vmatprep.subr.bf16.mxu0 0
        %327 = vmatpush1.bf16.msra.mxu0 0
        %328 = vmatprep.subr.bf16.mxu0 0
        %329 = vmatpush1.bf16.msra.mxu0 0
        %330 = vmatprep.subr.bf16.mxu0 0
        %331 = vmatpush1.bf16.msra.mxu0 0
        %332 = vmatprep.subr.bf16.mxu0 0
        %333 = vmatpush1.bf16.msra.mxu0 0
        %334 = vmatprep.subr.bf16.mxu0 0
        %335 = vmatpush1.bf16.msra.mxu0 0
        %336 = vmatprep.subr.bf16.mxu0 0
        %337 = vmatpush1.bf16.msra.mxu0 0
        %338 = vmatprep.subr.bf16.mxu0 0
        %339 = vmatpush1.bf16.msra.mxu0 0
        %340 = vmatprep.subr.bf16.mxu0 0
        %341 = vmatpush1.bf16.msra.mxu0 0
        %342 = vmatprep.subr.bf16.mxu0 0
        %343 = vmatpush1.bf16.msra.mxu0 0
        %344 = vmatprep.subr.bf16.mxu0 0
        %345 = vmatpush1.bf16.msra.mxu0 0
        %346 = vmatprep.mubr.bf16.mxu0 0
        %347 = vmatmul.mubr.bf16.gmra.mrb[0].mxu0 %v312
        %v348 = vpop.f32.mrb[0].mxu0
        %v349 = vadd.f32 %v296, %v348
        %v350 = vpop.f32.mrb[0].mxu0
        %v351 = vpop.f32.mrb[0].mxu0
        %v352 = vpop.f32.mrb[0].mxu0
        %353 = vdwg.mxu0
        %v354 = vmul.f32 %v349, 0.5
        %v355 = vmul.f32 %v349, 0.70710677
        %v356 = verf.f32.pop %v355
        %v357 = vadd.f32 %v356, 1.0
        %v358 = vmul.f32 %v354, %v357
        %v359 = vpack.c.bf16 %v358, %v358
        %vm360 = vcmask 253952
        %361 = vst.msk [vmem:[#allocation2] sm:$0x1] %vm360, %v359
        %v362 = vld [vmem:[#allocation2] sm:$0x1]
        %v363 = vld [vmem:[#allocation8] sm:$0xff]
        %v364 = vld [vmem:[#allocation8 + $0x8] sm:$0xff]
        %v365 = vld [vmem:[#allocation8 + $0x10] sm:$0xff]
        %v366 = vld [vmem:[#allocation8 + $0x18] sm:$0xff]
        %v367 = vld [vmem:[#allocation8 + $0x20] sm:$0xff]
        %v368 = vld [vmem:[#allocation8 + $0x28] sm:$0xff]
        %v369 = vld [vmem:[#allocation8 + $0x30] sm:$0xff]
        %v370 = vld [vmem:[#allocation8 + $0x38] sm:$0xff]
        %v371 = vld [vmem:[#allocation8 + $0x40] sm:$0xff]
        %v372 = vld [vmem:[#allocation8 + $0x48] sm:$0xff]
        %v373 = vld [vmem:[#allocation8 + $0x50] sm:$0xff]
        %v374 = vld [vmem:[#allocation8 + $0x58] sm:$0xff]
        %v375 = vld [vmem:[#allocation8 + $0x60] sm:$0xff]
        %v376 = vld [vmem:[#allocation8 + $0x68] sm:$0xff]
        %v377 = vld [vmem:[#allocation8 + $0x70] sm:$0xff]
        %v378 = vld [vmem:[#allocation8 + $0x78] sm:$0xff]
        %v379 = vld [vmem:[#allocation8 + $0x80] sm:$0xff]
        %v380 = vld [vmem:[#allocation8 + $0x88] sm:$0xff]
        %v381 = vld [vmem:[#allocation8 + $0x90] sm:$0xff]
        %v382 = vld [vmem:[#allocation8 + $0x98] sm:$0xff]
        %v383 = vld [vmem:[%s4] sm:$0xff]
        %v384 = vld [vmem:[%s4 + $0x8] sm:$0x3]
        %v387 = vlaneseq
        %v388 = vshrl.u32 %v387, 7
        %v389 = vsub.s32 0, %v388
        %v390 = vrot.slane %v383, %v389
        %v391 = vlaneseq
        %v392 = vshrl.u32 %v391, 7
        %v393 = vsub.s32 1, %v392
        %v394 = vrot.slane %v383, %v393
        %v395 = vlaneseq
        %v396 = vshrl.u32 %v395, 7
        %v397 = vsub.s32 2, %v396
        %v398 = vrot.slane %v383, %v397
        %v399 = vlaneseq
        %v400 = vshrl.u32 %v399, 7
        %v401 = vsub.s32 3, %v400
        %v402 = vrot.slane %v383, %v401
        %v403 = vlaneseq
        %v404 = vshrl.u32 %v403, 7
        %v405 = vsub.s32 4, %v404
        %v406 = vrot.slane %v383, %v405
        %v407 = vlaneseq
        %v408 = vshrl.u32 %v407, 7
        %v409 = vsub.s32 5, %v408
        %v410 = vrot.slane %v383, %v409
        %v411 = vlaneseq
        %v412 = vshrl.u32 %v411, 7
        %v413 = vsub.s32 6, %v412
        %v414 = vrot.slane %v383, %v413
        %v415 = vlaneseq
        %v416 = vshrl.u32 %v415, 7
        %v417 = vsub.s32 7, %v416
        %v418 = vrot.slane %v383, %v417
        %v419 = vlaneseq
        %v420 = vshrl.u32 %v419, 7
        %v421 = vsub.s32 0, %v420
        %v422 = vrot.slane %v384, %v421
        %v423 = vlaneseq
        %v424 = vshrl.u32 %v423, 7
        %v425 = vsub.s32 1, %v424
        %v426 = vrot.slane %v384, %v425
        %v457 = vunpack.c.l.b16 %v363
        %v458 = vunpack.c.h.b16 %v363
        %v459 = vunpack.c.l.b16 %v364
        %v460 = vunpack.c.h.b16 %v364
        %v461 = vunpack.c.l.b16 %v365
        %v462 = vunpack.c.h.b16 %v365
        %v463 = vunpack.c.l.b16 %v366
        %v464 = vunpack.c.h.b16 %v366
        %v465 = vunpack.c.l.b16 %v367
        %v466 = vunpack.c.h.b16 %v367
        %v467 = vunpack.c.l.b16 %v368
        %v468 = vunpack.c.h.b16 %v368
        %v469 = vunpack.c.l.b16 %v369
        %v470 = vunpack.c.h.b16 %v369
        %v471 = vunpack.c.l.b16 %v370
        %v472 = vunpack.c.h.b16 %v370
        %v473 = vunpack.c.l.b16 %v371
        %v474 = vunpack.c.h.b16 %v371
        %v475 = vunpack.c.l.b16 %v372
        %v476 = vunpack.c.h.b16 %v372
        %v477 = vunpack.c.l.b16 %v373
        %v478 = vunpack.c.h.b16 %v373
        %v479 = vunpack.c.l.b16 %v374
        %v480 = vunpack.c.h.b16 %v374
        %v481 = vunpack.c.l.b16 %v375
        %v482 = vunpack.c.h.b16 %v375
        %v483 = vunpack.c.l.b16 %v376
        %v484 = vunpack.c.h.b16 %v376
        %v485 = vunpack.c.l.b16 %v377
        %v486 = vunpack.c.h.b16 %v377
        %v487 = vunpack.c.l.b16 %v378
        %v488 = vunpack.c.h.b16 %v378
        %v489 = vunpack.c.l.b16 %v379
        %v490 = vunpack.c.h.b16 %v379
        %v491 = vunpack.c.l.b16 %v380
        %v492 = vunpack.c.h.b16 %v380
        %v493 = vunpack.c.l.b16 %v381
        %v494 = vunpack.c.h.b16 %v381
        %v495 = vunpack.c.l.b16 %v382
        %v496 = vunpack.c.h.b16 %v382
        %v497 = vpack.c.b16 %v467, %v457
        %v498 = vpack.c.b16 %v468, %v458
        %v499 = vpack.c.b16 %v469, %v459
        %v500 = vpack.c.b16 %v470, %v460
        %v501 = vpack.c.b16 %v471, %v461
        %v502 = vpack.c.b16 %v472, %v462
        %v503 = vpack.c.b16 %v473, %v463
        %v504 = vpack.c.b16 %v474, %v464
        %v505 = vpack.c.b16 %v475, %v465
        %v506 = vpack.c.b16 %v476, %v466
        %v507 = vpack.c.b16 %v487, %v477
        %v508 = vpack.c.b16 %v488, %v478
        %v509 = vpack.c.b16 %v489, %v479
        %v510 = vpack.c.b16 %v490, %v480
        %v511 = vpack.c.b16 %v491, %v481
        %v512 = vpack.c.b16 %v492, %v482
        %v513 = vpack.c.b16 %v493, %v483
        %v514 = vpack.c.b16 %v494, %v484
        %v515 = vpack.c.b16 %v495, %v485
        %v516 = vpack.c.b16 %v496, %v486
        %v538 = vsel %vm310, %v362, 0
        %540 = vmatprep.subr.bf16.mxu0 %v498
        %541 = vmatpush1.bf16.msra.mxu0 %v497
        %542 = vmatprep.subr.bf16.mxu0 %v508
        %543 = vmatpush1.bf16.msra.mxu0 %v507
        %544 = vmatprep.subr.bf16.mxu0 0
        %545 = vmatpush1.bf16.msra.mxu0 0
        %546 = vmatprep.subr.bf16.mxu0 0
        %547 = vmatpush1.bf16.msra.mxu0 0
        %548 = vmatprep.subr.bf16.mxu0 0
        %549 = vmatpush1.bf16.msra.mxu0 0
        %550 = vmatprep.subr.bf16.mxu0 0
        %551 = vmatpush1.bf16.msra.mxu0 0
        %552 = vmatprep.subr.bf16.mxu0 0
        %553 = vmatpush1.bf16.msra.mxu0 0
        %554 = vmatprep.subr.bf16.mxu0 0
        %555 = vmatpush1.bf16.msra.mxu0 0
        %556 = vmatprep.subr.bf16.mxu0 0
        %557 = vmatpush1.bf16.msra.mxu0 0
        %558 = vmatprep.subr.bf16.mxu0 0
        %559 = vmatpush1.bf16.msra.mxu0 0
        %560 = vmatprep.subr.bf16.mxu0 0
        %561 = vmatpush1.bf16.msra.mxu0 0
        %562 = vmatprep.subr.bf16.mxu0 0
        %563 = vmatpush1.bf16.msra.mxu0 0
        %564 = vmatprep.subr.bf16.mxu0 0
        %565 = vmatpush1.bf16.msra.mxu0 0
        %566 = vmatprep.subr.bf16.mxu0 0
        %567 = vmatpush1.bf16.msra.mxu0 0
        %568 = vmatprep.subr.bf16.mxu0 0
        %569 = vmatpush1.bf16.msra.mxu0 0
        %570 = vmatprep.subr.bf16.mxu0 0
        %571 = vmatpush1.bf16.msra.mxu0 0
        %572 = vmatprep.mubr.bf16.mxu0 0
        %573 = vmatmul.mubr.bf16.gmra.mrb[0].mxu0 %v538
        %v574 = vpop.f32.mrb[0].mxu0
        %v575 = vadd.f32 %v390, %v574
        %v576 = vpop.f32.mrb[0].mxu0
        %v577 = vadd.f32 %v394, %v576
        %v578 = vpop.f32.mrb[0].mxu0
        %v579 = vpop.f32.mrb[0].mxu0
        %580 = vdwg.mxu0
        %581 = vmatprep.subr.bf16.mxu0 %v500
        %582 = vmatpush1.bf16.msra.mxu0 %v499
        %583 = vmatprep.subr.bf16.mxu0 %v510
        %584 = vmatpush1.bf16.msra.mxu0 %v509
        %585 = vmatprep.subr.bf16.mxu0 0
        %586 = vmatpush1.bf16.msra.mxu0 0
        %587 = vmatprep.subr.bf16.mxu0 0
        %588 = vmatpush1.bf16.msra.mxu0 0
        %589 = vmatprep.subr.bf16.mxu0 0
        %590 = vmatpush1.bf16.msra.mxu0 0
        %591 = vmatprep.subr.bf16.mxu0 0
        %592 = vmatpush1.bf16.msra.mxu0 0
        %593 = vmatprep.subr.bf16.mxu0 0
        %594 = vmatpush1.bf16.msra.mxu0 0
        %595 = vmatprep.subr.bf16.mxu0 0
        %596 = vmatpush1.bf16.msra.mxu0 0
        %597 = vmatprep.subr.bf16.mxu0 0
        %598 = vmatpush1.bf16.msra.mxu0 0
        %599 = vmatprep.subr.bf16.mxu0 0
        %600 = vmatpush1.bf16.msra.mxu0 0
        %601 = vmatprep.subr.bf16.mxu0 0
        %602 = vmatpush1.bf16.msra.mxu0 0
        %603 = vmatprep.subr.bf16.mxu0 0
        %604 = vmatpush1.bf16.msra.mxu0 0
        %605 = vmatprep.subr.bf16.mxu0 0
        %606 = vmatpush1.bf16.msra.mxu0 0
        %607 = vmatprep.subr.bf16.mxu0 0
        %608 = vmatpush1.bf16.msra.mxu0 0
        %609 = vmatprep.subr.bf16.mxu0 0
        %610 = vmatpush1.bf16.msra.mxu0 0
        %611 = vmatprep.subr.bf16.mxu0 0
        %612 = vmatpush1.bf16.msra.mxu0 0
        %613 = vmatprep.mubr.bf16.mxu0 0
        %614 = vmatmul.mubr.bf16.gmra.mrb[0].mxu0 %v538
        %v615 = vpop.f32.mrb[0].mxu0
        %v616 = vadd.f32 %v398, %v615
        %v617 = vpop.f32.mrb[0].mxu0
        %v618 = vadd.f32 %v402, %v617
        %v619 = vpop.f32.mrb[0].mxu0
        %v620 = vpop.f32.mrb[0].mxu0
        %621 = vdwg.mxu0
        %622 = vmatprep.subr.bf16.mxu0 %v502
        %623 = vmatpush1.bf16.msra.mxu0 %v501
        %624 = vmatprep.subr.bf16.mxu0 %v512
        %625 = vmatpush1.bf16.msra.mxu0 %v511
        %626 = vmatprep.subr.bf16.mxu0 0
        %627 = vmatpush1.bf16.msra.mxu0 0
        %628 = vmatprep.subr.bf16.mxu0 0
        %629 = vmatpush1.bf16.msra.mxu0 0
        %630 = vmatprep.subr.bf16.mxu0 0
        %631 = vmatpush1.bf16.msra.mxu0 0
        %632 = vmatprep.subr.bf16.mxu0 0
        %633 = vmatpush1.bf16.msra.mxu0 0
        %634 = vmatprep.subr.bf16.mxu0 0
        %635 = vmatpush1.bf16.msra.mxu0 0
        %636 = vmatprep.subr.bf16.mxu0 0
        %637 = vmatpush1.bf16.msra.mxu0 0
        %638 = vmatprep.subr.bf16.mxu0 0
        %639 = vmatpush1.bf16.msra.mxu0 0
        %640 = vmatprep.subr.bf16.mxu0 0
        %641 = vmatpush1.bf16.msra.mxu0 0
        %642 = vmatprep.subr.bf16.mxu0 0
        %643 = vmatpush1.bf16.msra.mxu0 0
        %644 = vmatprep.subr.bf16.mxu0 0
        %645 = vmatpush1.bf16.msra.mxu0 0
        %646 = vmatprep.subr.bf16.mxu0 0
        %647 = vmatpush1.bf16.msra.mxu0 0
        %648 = vmatprep.subr.bf16.mxu0 0
        %649 = vmatpush1.bf16.msra.mxu0 0
        %650 = vmatprep.subr.bf16.mxu0 0
        %651 = vmatpush1.bf16.msra.mxu0 0
        %652 = vmatprep.subr.bf16.mxu0 0
        %653 = vmatpush1.bf16.msra.mxu0 0
        %654 = vmatprep.mubr.bf16.mxu0 0
        %655 = vmatmul.mubr.bf16.gmra.mrb[0].mxu0 %v538
        %v656 = vpop.f32.mrb[0].mxu0
        %v657 = vadd.f32 %v406, %v656
        %v658 = vpop.f32.mrb[0].mxu0
        %v659 = vadd.f32 %v410, %v658
        %v660 = vpop.f32.mrb[0].mxu0
        %v661 = vpop.f32.mrb[0].mxu0
        %662 = vdwg.mxu0
        %663 = vmatprep.subr.bf16.mxu0 %v504
        %664 = vmatpush1.bf16.msra.mxu0 %v503
        %665 = vmatprep.subr.bf16.mxu0 %v514
        %666 = vmatpush1.bf16.msra.mxu0 %v513
        %667 = vmatprep.subr.bf16.mxu0 0
        %668 = vmatpush1.bf16.msra.mxu0 0
        %669 = vmatprep.subr.bf16.mxu0 0
        %670 = vmatpush1.bf16.msra.mxu0 0
        %671 = vmatprep.subr.bf16.mxu0 0
        %672 = vmatpush1.bf16.msra.mxu0 0
        %673 = vmatprep.subr.bf16.mxu0 0
        %674 = vmatpush1.bf16.msra.mxu0 0
        %675 = vmatprep.subr.bf16.mxu0 0
        %676 = vmatpush1.bf16.msra.mxu0 0
        %677 = vmatprep.subr.bf16.mxu0 0
        %678 = vmatpush1.bf16.msra.mxu0 0
        %679 = vmatprep.subr.bf16.mxu0 0
        %680 = vmatpush1.bf16.msra.mxu0 0
        %681 = vmatprep.subr.bf16.mxu0 0
        %682 = vmatpush1.bf16.msra.mxu0 0
        %683 = vmatprep.subr.bf16.mxu0 0
        %684 = vmatpush1.bf16.msra.mxu0 0
        %685 = vmatprep.subr.bf16.mxu0 0
        %686 = vmatpush1.bf16.msra.mxu0 0
        %687 = vmatprep.subr.bf16.mxu0 0
        %688 = vmatpush1.bf16.msra.mxu0 0
        %689 = vmatprep.subr.bf16.mxu0 0
        %690 = vmatpush1.bf16.msra.mxu0 0
        %691 = vmatprep.subr.bf16.mxu0 0
        %692 = vmatpush1.bf16.msra.mxu0 0
        %693 = vmatprep.subr.bf16.mxu0 0
        %694 = vmatpush1.bf16.msra.mxu0 0
        %695 = vmatprep.mubr.bf16.mxu0 0
        %696 = vmatmul.mubr.bf16.gmra.mrb[0].mxu0 %v538
        %v697 = vpop.f32.mrb[0].mxu0
        %v698 = vadd.f32 %v414, %v697
        %v699 = vpop.f32.mrb[0].mxu0
        %v700 = vadd.f32 %v418, %v699
        %v701 = vpop.f32.mrb[0].mxu0
        %v702 = vpop.f32.mrb[0].mxu0
        %703 = vdwg.mxu0
        %704 = vmatprep.subr.bf16.mxu0 %v506
        %705 = vmatpush1.bf16.msra.mxu0 %v505
        %706 = vmatprep.subr.bf16.mxu0 %v516
        %707 = vmatpush1.bf16.msra.mxu0 %v515
        %708 = vmatprep.subr.bf16.mxu0 0
        %709 = vmatpush1.bf16.msra.mxu0 0
        %710 = vmatprep.subr.bf16.mxu0 0
        %711 = vmatpush1.bf16.msra.mxu0 0
        %712 = vmatprep.subr.bf16.mxu0 0
        %713 = vmatpush1.bf16.msra.mxu0 0
        %714 = vmatprep.subr.bf16.mxu0 0
        %715 = vmatpush1.bf16.msra.mxu0 0
        %716 = vmatprep.subr.bf16.mxu0 0
        %717 = vmatpush1.bf16.msra.mxu0 0
        %718 = vmatprep.subr.bf16.mxu0 0
        %719 = vmatpush1.bf16.msra.mxu0 0
        %720 = vmatprep.subr.bf16.mxu0 0
        %721 = vmatpush1.bf16.msra.mxu0 0
        %722 = vmatprep.subr.bf16.mxu0 0
        %723 = vmatpush1.bf16.msra.mxu0 0
        %724 = vmatprep.subr.bf16.mxu0 0
        %725 = vmatpush1.bf16.msra.mxu0 0
        %726 = vmatprep.subr.bf16.mxu0 0
        %727 = vmatpush1.bf16.msra.mxu0 0
        %728 = vmatprep.subr.bf16.mxu0 0
        %729 = vmatpush1.bf16.msra.mxu0 0
        %730 = vmatprep.subr.bf16.mxu0 0
        %731 = vmatpush1.bf16.msra.mxu0 0
        %732 = vmatprep.subr.bf16.mxu0 0
        %733 = vmatpush1.bf16.msra.mxu0 0
        %734 = vmatprep.subr.bf16.mxu0 0
        %735 = vmatpush1.bf16.msra.mxu0 0
        %736 = vmatprep.mubr.bf16.mxu0 0
        %737 = vmatmul.mubr.bf16.gmra.mrb[0].mxu0 %v538
        %v738 = vpop.f32.mrb[0].mxu0
        %v739 = vadd.f32 %v422, %v738
        %v740 = vpop.f32.mrb[0].mxu0
        %v741 = vadd.f32 %v426, %v740
        %v742 = vpop.f32.mrb[0].mxu0
        %v743 = vpop.f32.mrb[0].mxu0
        %744 = vdwg.mxu0
        %v755 = vcombine.low %v575, %v577
        %v756 = vcombine.low %v616, %v618
        %v758 = vunpack.c.l.s4 1983009808
        %v759 = vunpack.c.0.s8 %v758
        %v760 = vlaneseq
        %v761 = vshrl.u32 %v760, 7
        %v762 = vsub.s32 %v759, %v761
        %v763 = vrot.slane %v755, %v762
        %v765 = vunpack.c.l.s4 1983009808
        %v766 = vunpack.c.0.s8 %v765
        %v767 = vlaneseq
        %v768 = vshrl.u32 %v767, 7
        %v769 = vsub.s32 %v766, %v768
        %v770 = vrot.slane %v756, %v769
        %v771 = vcombine.low %v763, %v770
        %v772 = vcombine.low %v657, %v659
        %v773 = vcombine.low %v698, %v700
        %v775 = vunpack.c.l.s4 1983009808
        %v776 = vunpack.c.0.s8 %v775
        %v777 = vlaneseq
        %v778 = vshrl.u32 %v777, 7
        %v779 = vsub.s32 %v776, %v778
        %v780 = vrot.slane %v772, %v779
        %v782 = vunpack.c.l.s4 1983009808
        %v783 = vunpack.c.0.s8 %v782
        %v784 = vlaneseq
        %v785 = vshrl.u32 %v784, 7
        %v786 = vsub.s32 %v783, %v785
        %v787 = vrot.slane %v773, %v786
        %v788 = vcombine.low %v780, %v787
        %v789 = vcombine.low %v739, %v741
        %v791 = vunpack.c.l.s4 1983009808
        %v792 = vunpack.c.0.s8 %v791
        %v793 = vlaneseq
        %v794 = vshrl.u32 %v793, 7
        %v795 = vsub.s32 %v792, %v794
        %v796 = vrot.slane %v789, %v795
        %800 = vst [vmem:[%s280] sm:$0xff] %v771
        %801 = vst [vmem:[%s280 + $0x8] sm:$0xff] %v788
        %802 = vst [vmem:[%s280 + $0x10] sm:$0xf] %v796
        %s803 = sand.u32 %s146, 1
        %s804 = scalar_lea.sflag [#allocation5], %s803
        %s805 = sand.u32 %s146, 1
        %s806 = smul.addr %s805, 20
        %s807 = scalar_lea.vmem [#allocation9], %s806
        // Predicated region
        $region53: #{tpu_custom_call.1} parent=39 // pred_check
          %p808 = pneg %p156
        $region54: #{tpu_custom_call.1} parent=39 // pred_check_branch
          %810 = sbr.rel (%p808) target = $region56
        $region55: #{tpu_custom_call.1} parent=39 // pred_region
          %s812 = ssub.s32 320, 320
          %813 = vsyncadd %s804, %s812
          %s814 = smul.addr %s23, 10
          %s815 = smul.addr %s814, 32
          %s816 = scalar_lea.hbm %s5, %s815
          %s818 = sshll.u32 %s807, 4
          %s819 = int_to_ptr.vmem [resolvable:$true] %s818
          %821 = dma.vmem_to_hbm [thread:$0]  %s819, 320, %s816, %s804
        $region56: #{tpu_custom_call.1} parent=39 // pred_fallthru
          _
      $region40: #{tpu_custom_call.1} parent=5 // pred_fallthru
        _
      %p822 = scmp.le.s32.totalorder 2, %s18
      // Predicated region
      $region57: #{tpu_custom_call.1} parent=5 // pred_check
        %p823 = pneg %p822
      $region58: #{tpu_custom_call.1} parent=5 // pred_check_branch
        %825 = sbr.rel (%p823) target = $region60
      $region59: #{tpu_custom_call.1} parent=5 // pred_region
        %s826 = ssub.s32 %s18, 2
        // Predicated region
        $region61: #{tpu_custom_call.1} parent=59 // pred_check
          %p827 = pneg %p162
        $region62: #{tpu_custom_call.1} parent=59 // pred_check_branch
          %829 = sbr.rel (%p827) target = $region64
        $region63: #{tpu_custom_call.1} parent=59 // pred_region
          %s830 = sand.u32 %s147, 1
          %s831 = scalar_lea.sflag [#allocation5], %s830
          %s832 = sand.u32 %s147, 1
          %s833 = smul.addr %s832, 20
          %s834 = scalar_lea.vmem [#allocation9], %s833
          %835 = dma.done %s831, 320
        $region64: #{tpu_custom_call.1} parent=59 // pred_fallthru
          _
      $region60: #{tpu_custom_call.1} parent=5 // pred_fallthru
        _
    $region6: #{tpu_custom_call.1} parent=1 // loop_footer
      %s22 = sadd.s32 1, %s18
    $region7: #{tpu_custom_call.1} parent=1 // loop_footer_branch
      %17 = sbr.rel target = $region3
    $region8: #{tpu_custom_call.1} parent=1 // loop_exit
      _
    %836 = vsyncpa [#allocation4], 1
    %s837 = scalar_lea.sflag [#allocation4], 1
    %838 = vsyncpa %s837, 1
    %839 = vsyncpa [#allocation7], 1
    %s840 = scalar_lea.sflag [#allocation7], 1
    %841 = vsyncpa %s840, 1
    %842 = vsyncpa [#allocation5], 1
    %s843 = scalar_lea.sflag [#allocation5], 1
    %844 = vsyncpa %s843, 1

</llo_original>
